<compile_context>
chip_gen: v7x
topology: tpu7x:2x2x1
jax: 0.10.0
libtpu: 0.0.40
codegen_flags: <defaults>
</compile_context>

<pallas_src>
import jax
import jax.numpy as jnp
from jax.experimental import pallas as pl
from jax.experimental.pallas import tpu as pltpu


def _round_up(x, m):
    return ((x + m - 1) // m) * m


def euclidean_flow_kernel(c_ref, r_ref, t_ref,
                          w1c_ref, w1r_ref, b1_ref,
                          w2_ref, b2_ref,
                          w3_ref, b3_ref,
                          w4s_ref, b4s_ref,
                          w4m_ref, b4m_ref,
                          t_new_ref):
    # Activations cast to bf16 for the MXU; accumulation and elementwise in f32.
    c = c_ref[...].astype(jnp.bfloat16)              # (TB, n_shape)
    r = r_ref[...].astype(jnp.bfloat16)              # (TB, 9)
    t = t_ref[...]                                   # (TB, 128) f32, lanes 3.. are 0

    # layer1: [C | R9] @ W1 + b1 == C @ W1_c + R9 @ W1_r + b1
    h = (jnp.dot(c, w1c_ref[...], preferred_element_type=jnp.float32)
         + jnp.dot(r, w1r_ref[...], preferred_element_type=jnp.float32)
         + b1_ref[...])

    # x = x + relu(layer2(x))
    h = h + jnp.maximum(
        jnp.dot(h.astype(jnp.bfloat16), w2_ref[...],
                preferred_element_type=jnp.float32) + b2_ref[...], 0.0)
    # x = x + relu(layer3(x))
    h = h + jnp.maximum(
        jnp.dot(h.astype(jnp.bfloat16), w3_ref[...],
                preferred_element_type=jnp.float32) + b3_ref[...], 0.0)

    # x = relu(layer4(x)); layer4 is split column-wise into sig / mu halves,
    # each zero-padded to 128 lanes (relu commutes with the column split).
    hb = h.astype(jnp.bfloat16)
    sig = jnp.maximum(
        jnp.dot(hb, w4s_ref[...], preferred_element_type=jnp.float32)
        + b4s_ref[...], 0.0)                         # (TB, 128); valid lanes 0..2
    mu = jnp.maximum(
        jnp.dot(hb, w4m_ref[...], preferred_element_type=jnp.float32)
        + b4m_ref[...], 0.0)                         # (TB, 128); valid lanes 0..2

    # Lane-dense store; padded lanes produce garbage that the wrapper slices off.
    t_new_ref[...] = t * jnp.exp(sig) + mu


def init_params(key, n_in, n_hidden, n_out):
    """PyTorch-nn.Linear-style init; weights stored as (in_features, out_features)."""
    dims = [(n_in, n_hidden), (n_hidden, n_hidden),
            (n_hidden, n_hidden), (n_hidden, n_out)]
    params = []
    for (fan_in, fan_out) in dims:
        key, kw, kb = jax.random.split(key, 3)
        bound = 1.0 / jnp.sqrt(fan_in)
        w = jax.random.uniform(kw, (fan_in, fan_out), jnp.float32, -bound, bound)
        b = jax.random.uniform(kb, (1, fan_out), jnp.float32, -bound, bound)
        params += [w, b]
    return tuple(params)


def prepare_params(params, n_shape):
    """Split W1 by input (C vs R9), split+pad layer4 to 128 lanes, cast weights
    to bf16 (biases stay f32 since they are added after f32 accumulation)."""
    w1, b1, w2, b2, w3, b3, w4, b4 = params
    Nh = w1.shape[1]

    w1_c = w1[:n_shape].astype(jnp.bfloat16)                       # (n_shape, Nh)
    w1_r = w1[n_shape:].astype(jnp.bfloat16)                       # (9, Nh)

    w4_sig = jnp.zeros((Nh, 128), jnp.float32).at[:, :3].set(w4[:, :3]).astype(jnp.bfloat16)
    w4_mu = jnp.zeros((Nh, 128), jnp.float32).at[:, :3].set(w4[:, 3:6]).astype(jnp.bfloat16)
    b4_sig = jnp.zeros((1, 128), jnp.float32).at[:, :3].set(b4[:, :3])
    b4_mu = jnp.zeros((1, 128), jnp.float32).at[:, :3].set(b4[:, 3:6])

    return (w1_c, w1_r, b1.astype(jnp.float32),
            w2.astype(jnp.bfloat16), b2.astype(jnp.float32),
            w3.astype(jnp.bfloat16), b3.astype(jnp.float32),
            w4_sig, b4_sig, w4_mu, b4_mu)


def euclidean_flow_forward(R, t, C, params, *, batch_tile=256):
    """Pallas forward:  returns (R, t_new) like EuclideanFlow.forward."""
    B = R.shape[0]
    n_shape = C.shape[1]
    Nh = params[0].shape[1]

    R9 = R.reshape(B, 9).astype(jnp.float32)
    C_f = C.astype(jnp.float32)
    t_f = t.astype(jnp.float32)

    # Batch tile: up to `batch_tile` rows, padded to a multiple of 8 (sublanes).
    TB = min(batch_tile, _round_up(B, 8))
    B_pad = _round_up(B, TB)

    C_p = jnp.zeros((B_pad, n_shape), jnp.float32).at[:B].set(C_f)
    R_p = jnp.zeros((B_pad, 9), jnp.float32).at[:B].set(R9)
    t_p = jnp.zeros((B_pad, 128), jnp.float32).at[:B, :3].set(t_f)   # lane-dense t

    kparams = prepare_params(params, n_shape)

    def row_spec(width):
        return pl.BlockSpec((TB, width), lambda i: (i, 0))

    def resident_spec(shape):
        # Same block at every grid step -> weights stay VMEM-resident.
        return pl.BlockSpec(shape, lambda i: (0, 0))

    in_specs = ([row_spec(n_shape), row_spec(9), row_spec(128)]
                + [resident_spec(p.shape) for p in kparams])

    flops = 2 * B_pad * ((n_shape + 9) * Nh + 2 * Nh * Nh + 2 * Nh * 128)
    bytes_accessed = int(
        (C_p.size + R_p.size + t_p.size + B_pad * 128) * 4
        + sum(int(p.size) * p.dtype.itemsize for p in kparams))

    t_new_pad = pl.pallas_call(
        euclidean_flow_kernel,
        out_shape=jax.ShapeDtypeStruct((B_pad, 128), jnp.float32),
        grid=(B_pad // TB,),
        in_specs=in_specs,
        out_specs=row_spec(128),
        compiler_params=pltpu.CompilerParams(
            dimension_semantics=("parallel",)),
        cost_estimate=pl.CostEstimate(
            flops=int(flops),
            transcendentals=int(B_pad * 128),
            bytes_accessed=bytes_accessed),
    )(C_p, R_p, t_p, *kparams)

    return R, t_new_pad[:B, :3]


def reference_forward(R, t, C, params):
    """Plain-JAX f32 reference for correctness check."""
    B = R.shape[0]
    x = jnp.concatenate([C, R.reshape(B, 9)], axis=1).astype(jnp.float32)
    w1, b1, w2, b2, w3, b3, w4, b4 = params
    h = x @ w1 + b1
    h = h + jax.nn.relu(h @ w2 + b2)
    h = h + jax.nn.relu(h @ w3 + b3)
    out = jax.nn.relu(h @ w4 + b4)
    sig, mu = out[:, :3], out[:, 3:]
    return R, t * jnp.exp(sig) + mu


if __name__ == "__main__":
    B = 8
    n_shape = 23          # -> net input = n_shape + 9 = 32
    xyz_index = 0         # unused in forward (only affects the inverse buffer)
    Nh = 256
    No = 6                # 3 * 2

    key = jax.random.PRNGKey(0)
    kp, kr, kt, kc = jax.random.split(key, 4)
    params = init_params(kp, n_shape + 9, Nh, No)

    R = jax.random.normal(kr, (B, 3, 3), jnp.float32)
    t = jax.random.normal(kt, (B, 3), jnp.float32)
    C = jax.random.normal(kc, (B, n_shape), jnp.float32)

    R_out, t_new = euclidean_flow_forward(R, t, C, params)
    jax.block_until_ready(t_new)

    R_ref, t_ref = reference_forward(R, t, C, params)
    assert jnp.allclose(R_out, R_ref)
    # bf16 matmul operands (f32 accumulation) -> loosened tolerance vs f32 ref.
    err = float(jnp.max(jnp.abs(t_new - t_ref)))
    assert jnp.allclose(t_new, t_ref, atol=5e-2, rtol=5e-2), f"max abs err {err}"

    print("KERNEL_OK")
</pallas_src>

<mosaic_0001>
module attributes {stable_mosaic.version = 11 : i64} {
  func.func @euclidean_flow_kernel(%arg0: i32, %arg1: memref<8x23xf32, #tpu.memory_space<vmem>>, %arg2: memref<8x9xf32, #tpu.memory_space<vmem>>, %arg3: memref<8x128xf32, #tpu.memory_space<vmem>>, %arg4: memref<23x256xbf16, #tpu.memory_space<vmem>>, %arg5: memref<9x256xbf16, #tpu.memory_space<vmem>>, %arg6: memref<1x256xf32, #tpu.memory_space<vmem>>, %arg7: memref<256x256xbf16, #tpu.memory_space<vmem>>, %arg8: memref<1x256xf32, #tpu.memory_space<vmem>>, %arg9: memref<256x256xbf16, #tpu.memory_space<vmem>>, %arg10: memref<1x256xf32, #tpu.memory_space<vmem>>, %arg11: memref<256x128xbf16, #tpu.memory_space<vmem>>, %arg12: memref<1x128xf32, #tpu.memory_space<vmem>>, %arg13: memref<256x128xbf16, #tpu.memory_space<vmem>>, %arg14: memref<1x128xf32, #tpu.memory_space<vmem>>, %arg15: memref<8x128xf32, #tpu.memory_space<vmem>>) attributes {dimension_semantics = [#tpu.dimension_semantics<parallel>], iteration_bounds = array<i64: 1>, scalar_prefetch = 0 : i64, scratch_operands = 0 : i64, tpu.core_type = #tpu.core_type<tc>, window_params = [{transform_indices = @transform_0, window_bounds = array<i64: 8, 23>}, {transform_indices = @transform_1, window_bounds = array<i64: 8, 9>}, {transform_indices = @transform_2, window_bounds = array<i64: 8, 128>}, {pipeline_mode = #tpu.pipeline_mode<synchronous>, transform_indices = @transform_3, window_bounds = array<i64: 23, 256>}, {pipeline_mode = #tpu.pipeline_mode<synchronous>, transform_indices = @transform_4, window_bounds = array<i64: 9, 256>}, {pipeline_mode = #tpu.pipeline_mode<synchronous>, transform_indices = @transform_5, window_bounds = array<i64: 1, 256>}, {pipeline_mode = #tpu.pipeline_mode<synchronous>, transform_indices = @transform_6, window_bounds = array<i64: 256, 256>}, {pipeline_mode = #tpu.pipeline_mode<synchronous>, transform_indices = @transform_7, window_bounds = array<i64: 1, 256>}, {pipeline_mode = #tpu.pipeline_mode<synchronous>, transform_indices = @transform_8, window_bounds = array<i64: 256, 256>}, {pipeline_mode = #tpu.pipeline_mode<synchronous>, transform_indices = @transform_9, window_bounds = array<i64: 1, 256>}, {pipeline_mode = #tpu.pipeline_mode<synchronous>, transform_indices = @transform_10, window_bounds = array<i64: 256, 128>}, {pipeline_mode = #tpu.pipeline_mode<synchronous>, transform_indices = @transform_11, window_bounds = array<i64: 1, 128>}, {pipeline_mode = #tpu.pipeline_mode<synchronous>, transform_indices = @transform_12, window_bounds = array<i64: 256, 128>}, {pipeline_mode = #tpu.pipeline_mode<synchronous>, transform_indices = @transform_13, window_bounds = array<i64: 1, 128>}, {transform_indices = @transform_14, window_bounds = array<i64: 8, 128>}]} {
    %c0 = arith.constant 0 : index
    %c0_0 = arith.constant 0 : index
    %0 = vector.load %arg1[%c0, %c0_0] : memref<8x23xf32, #tpu.memory_space<vmem>>, vector<8x23xf32>
    %1 = arith.truncf %0 : vector<8x23xf32> to vector<8x23xbf16>
    %c0_1 = arith.constant 0 : index
    %c0_2 = arith.constant 0 : index
    %2 = vector.load %arg2[%c0_1, %c0_2] : memref<8x9xf32, #tpu.memory_space<vmem>>, vector<8x9xf32>
    %3 = arith.truncf %2 : vector<8x9xf32> to vector<8x9xbf16>
    %c0_3 = arith.constant 0 : index
    %c0_4 = arith.constant 0 : index
    %4 = vector.load %arg3[%c0_3, %c0_4] : memref<8x128xf32, #tpu.memory_space<vmem>>, vector<8x128xf32>
    %c0_5 = arith.constant 0 : index
    %c0_6 = arith.constant 0 : index
    %5 = vector.load %arg4[%c0_5, %c0_6] : memref<23x256xbf16, #tpu.memory_space<vmem>>, vector<23x256xbf16>
    %cst = arith.constant dense<0.000000e+00> : vector<8x256xf32>
    %6 = tpu.matmul %1, %5, %cst {dimension_numbers = #tpu.dot_dimension_numbers<[1], [0], [0], [1], [0, 0, 1, 1], [], []>} : vector<8x23xbf16>, vector<23x256xbf16>, vector<8x256xf32> -> vector<8x256xf32>
    %c0_7 = arith.constant 0 : index
    %c0_8 = arith.constant 0 : index
    %7 = vector.load %arg5[%c0_7, %c0_8] : memref<9x256xbf16, #tpu.memory_space<vmem>>, vector<9x256xbf16>
    %cst_9 = arith.constant dense<0.000000e+00> : vector<8x256xf32>
    %8 = tpu.matmul %3, %7, %cst_9 {dimension_numbers = #tpu.dot_dimension_numbers<[1], [0], [0], [1], [0, 0, 1, 1], [], []>} : vector<8x9xbf16>, vector<9x256xbf16>, vector<8x256xf32> -> vector<8x256xf32>
    %9 = arith.addf %6, %8 : vector<8x256xf32>
    %c0_10 = arith.constant 0 : index
    %c0_11 = arith.constant 0 : index
    %10 = vector.load %arg6[%c0_10, %c0_11] : memref<1x256xf32, #tpu.memory_space<vmem>>, vector<1x256xf32>
    %11 = vector.broadcast %10 : vector<1x256xf32> to vector<8x256xf32>
    %12 = arith.addf %9, %11 : vector<8x256xf32>
    %13 = arith.truncf %12 : vector<8x256xf32> to vector<8x256xbf16>
    %c0_12 = arith.constant 0 : index
    %c0_13 = arith.constant 0 : index
    %14 = vector.load %arg7[%c0_12, %c0_13] : memref<256x256xbf16, #tpu.memory_space<vmem>>, vector<256x256xbf16>
    %cst_14 = arith.constant dense<0.000000e+00> : vector<8x256xf32>
    %15 = tpu.matmul %13, %14, %cst_14 {dimension_numbers = #tpu.dot_dimension_numbers<[1], [0], [0], [1], [0, 0, 1, 1], [], []>} : vector<8x256xbf16>, vector<256x256xbf16>, vector<8x256xf32> -> vector<8x256xf32>
    %c0_15 = arith.constant 0 : index
    %c0_16 = arith.constant 0 : index
    %16 = vector.load %arg8[%c0_15, %c0_16] : memref<1x256xf32, #tpu.memory_space<vmem>>, vector<1x256xf32>
    %17 = vector.broadcast %16 : vector<1x256xf32> to vector<8x256xf32>
    %18 = arith.addf %15, %17 : vector<8x256xf32>
    %cst_17 = arith.constant 0.000000e+00 : f32
    %19 = vector.broadcast %cst_17 : f32 to vector<8x256xf32>
    %20 = arith.maximumf %18, %19 : vector<8x256xf32>
    %21 = arith.addf %12, %20 : vector<8x256xf32>
    %22 = arith.truncf %21 : vector<8x256xf32> to vector<8x256xbf16>
    %c0_18 = arith.constant 0 : index
    %c0_19 = arith.constant 0 : index
    %23 = vector.load %arg9[%c0_18, %c0_19] : memref<256x256xbf16, #tpu.memory_space<vmem>>, vector<256x256xbf16>
    %cst_20 = arith.constant dense<0.000000e+00> : vector<8x256xf32>
    %24 = tpu.matmul %22, %23, %cst_20 {dimension_numbers = #tpu.dot_dimension_numbers<[1], [0], [0], [1], [0, 0, 1, 1], [], []>} : vector<8x256xbf16>, vector<256x256xbf16>, vector<8x256xf32> -> vector<8x256xf32>
    %c0_21 = arith.constant 0 : index
    %c0_22 = arith.constant 0 : index
    %25 = vector.load %arg10[%c0_21, %c0_22] : memref<1x256xf32, #tpu.memory_space<vmem>>, vector<1x256xf32>
    %26 = vector.broadcast %25 : vector<1x256xf32> to vector<8x256xf32>
    %27 = arith.addf %24, %26 : vector<8x256xf32>
    %cst_23 = arith.constant 0.000000e+00 : f32
    %28 = vector.broadcast %cst_23 : f32 to vector<8x256xf32>
    %29 = arith.maximumf %27, %28 : vector<8x256xf32>
    %30 = arith.addf %21, %29 : vector<8x256xf32>
    %31 = arith.truncf %30 : vector<8x256xf32> to vector<8x256xbf16>
    %c0_24 = arith.constant 0 : index
    %c0_25 = arith.constant 0 : index
    %32 = vector.load %arg11[%c0_24, %c0_25] : memref<256x128xbf16, #tpu.memory_space<vmem>>, vector<256x128xbf16>
    %cst_26 = arith.constant dense<0.000000e+00> : vector<8x128xf32>
    %33 = tpu.matmul %31, %32, %cst_26 {dimension_numbers = #tpu.dot_dimension_numbers<[1], [0], [0], [1], [0, 0, 1, 1], [], []>} : vector<8x256xbf16>, vector<256x128xbf16>, vector<8x128xf32> -> vector<8x128xf32>
    %c0_27 = arith.constant 0 : index
    %c0_28 = arith.constant 0 : index
    %34 = vector.load %arg12[%c0_27, %c0_28] : memref<1x128xf32, #tpu.memory_space<vmem>>, vector<1x128xf32>
    %35 = vector.broadcast %34 : vector<1x128xf32> to vector<8x128xf32>
    %36 = arith.addf %33, %35 : vector<8x128xf32>
    %cst_29 = arith.constant 0.000000e+00 : f32
    %37 = vector.broadcast %cst_29 : f32 to vector<8x128xf32>
    %38 = arith.maximumf %36, %37 : vector<8x128xf32>
    %c0_30 = arith.constant 0 : index
    %c0_31 = arith.constant 0 : index
    %39 = vector.load %arg13[%c0_30, %c0_31] : memref<256x128xbf16, #tpu.memory_space<vmem>>, vector<256x128xbf16>
    %cst_32 = arith.constant dense<0.000000e+00> : vector<8x128xf32>
    %40 = tpu.matmul %31, %39, %cst_32 {dimension_numbers = #tpu.dot_dimension_numbers<[1], [0], [0], [1], [0, 0, 1, 1], [], []>} : vector<8x256xbf16>, vector<256x128xbf16>, vector<8x128xf32> -> vector<8x128xf32>
    %c0_33 = arith.constant 0 : index
    %c0_34 = arith.constant 0 : index
    %41 = vector.load %arg14[%c0_33, %c0_34] : memref<1x128xf32, #tpu.memory_space<vmem>>, vector<1x128xf32>
    %42 = vector.broadcast %41 : vector<1x128xf32> to vector<8x128xf32>
    %43 = arith.addf %40, %42 : vector<8x128xf32>
    %cst_35 = arith.constant 0.000000e+00 : f32
    %44 = vector.broadcast %cst_35 : f32 to vector<8x128xf32>
    %45 = arith.maximumf %43, %44 : vector<8x128xf32>
    %46 = math.exp %38 : vector<8x128xf32>
    %47 = arith.mulf %4, %46 : vector<8x128xf32>
    %48 = arith.addf %47, %45 : vector<8x128xf32>
    %c0_36 = arith.constant 0 : index
    %c0_37 = arith.constant 0 : index
    %49 = vector.load %arg15[%c0_36, %c0_37] : memref<8x128xf32, #tpu.memory_space<vmem>>, vector<8x128xf32>
    tpu.vector_store %arg15[%c0_36, %c0_37], %48 {strides = array<i32>} : memref<8x128xf32, #tpu.memory_space<vmem>>, vector<8x128xf32>,
    return
  }
  func.func @transform_0(%arg0: i32) -> (i32, i32) {
    %c0_i32 = arith.constant 0 : i32
    %c0_i32_0 = arith.constant 0 : i32
    return %arg0, %c0_i32 : i32, i32
  }
  func.func @transform_1(%arg0: i32) -> (i32, i32) {
    %c0_i32 = arith.constant 0 : i32
    %c0_i32_0 = arith.constant 0 : i32
    return %arg0, %c0_i32 : i32, i32
  }
  func.func @transform_2(%arg0: i32) -> (i32, i32) {
    %c0_i32 = arith.constant 0 : i32
    %c0_i32_0 = arith.constant 0 : i32
    return %arg0, %c0_i32 : i32, i32
  }
  func.func @transform_3(%arg0: i32) -> (i32, i32) {
    %c0_i32 = arith.constant 0 : i32
    %c0_i32_0 = arith.constant 0 : i32
    %c0_i32_1 = arith.constant 0 : i32
    return %c0_i32, %c0_i32_0 : i32, i32
  }
  func.func @transform_4(%arg0: i32) -> (i32, i32) {
    %c0_i32 = arith.constant 0 : i32
    %c0_i32_0 = arith.constant 0 : i32
    %c0_i32_1 = arith.constant 0 : i32
    return %c0_i32, %c0_i32_0 : i32, i32
  }
  func.func @transform_5(%arg0: i32) -> (i32, i32) {
    %c0_i32 = arith.constant 0 : i32
    %c0_i32_0 = arith.constant 0 : i32
    %c0_i32_1 = arith.constant 0 : i32
    return %c0_i32, %c0_i32_0 : i32, i32
  }
  func.func @transform_6(%arg0: i32) -> (i32, i32) {
    %c0_i32 = arith.constant 0 : i32
    %c0_i32_0 = arith.constant 0 : i32
    %c0_i32_1 = arith.constant 0 : i32
    return %c0_i32, %c0_i32_0 : i32, i32
  }
  func.func @transform_7(%arg0: i32) -> (i32, i32) {
    %c0_i32 = arith.constant 0 : i32
    %c0_i32_0 = arith.constant 0 : i32
    %c0_i32_1 = arith.constant 0 : i32
    return %c0_i32, %c0_i32_0 : i32, i32
  }
  func.func @transform_8(%arg0: i32) -> (i32, i32) {
    %c0_i32 = arith.constant 0 : i32
    %c0_i32_0 = arith.constant 0 : i32
    %c0_i32_1 = arith.constant 0 : i32
    return %c0_i32, %c0_i32_0 : i32, i32
  }
  func.func @transform_9(%arg0: i32) -> (i32, i32) {
    %c0_i32 = arith.constant 0 : i32
    %c0_i32_0 = arith.constant 0 : i32
    %c0_i32_1 = arith.constant 0 : i32
    return %c0_i32, %c0_i32_0 : i32, i32
  }
  func.func @transform_10(%arg0: i32) -> (i32, i32) {
    %c0_i32 = arith.constant 0 : i32
    %c0_i32_0 = arith.constant 0 : i32
    %c0_i32_1 = arith.constant 0 : i32
    return %c0_i32, %c0_i32_0 : i32, i32
  }
  func.func @transform_11(%arg0: i32) -> (i32, i32) {
    %c0_i32 = arith.constant 0 : i32
    %c0_i32_0 = arith.constant 0 : i32
    %c0_i32_1 = arith.constant 0 : i32
    return %c0_i32, %c0_i32_0 : i32, i32
  }
  func.func @transform_12(%arg0: i32) -> (i32, i32) {
    %c0_i32 = arith.constant 0 : i32
    %c0_i32_0 = arith.constant 0 : i32
    %c0_i32_1 = arith.constant 0 : i32
    return %c0_i32, %c0_i32_0 : i32, i32
  }
  func.func @transform_13(%arg0: i32) -> (i32, i32) {
    %c0_i32 = arith.constant 0 : i32
    %c0_i32_0 = arith.constant 0 : i32
    %c0_i32_1 = arith.constant 0 : i32
    return %c0_i32, %c0_i32_0 : i32, i32
  }
  func.func @transform_14(%arg0: i32) -> (i32, i32) {
    %c0_i32 = arith.constant 0 : i32
    %c0_i32_0 = arith.constant 0 : i32
    return %arg0, %c0_i32 : i32, i32
  }
}

</mosaic_0001>

<llo_original>
// kernel: tpu_custom_call.1
$region0: #{tpu_custom_call.1}
  #allocation0 [shape = 'u32[]', space=smem, size = 0x4, offset = 0x4, fixed_abs, tag = 'smem constant byte address 0x4 - core index']
  #allocation1 [shape = 'u32[144,128]{1,0:T(1,128)}', space=vmem, size = 0x12000, scoped, tag = 'internal scratch']
  %s0 = inlined_call_operand.hbm [shape: f32[8,23], index: 0, kind: input, shape index: {}]
  %s1 = inlined_call_operand.hbm [shape: f32[8,9], index: 1, kind: input, shape index: {}]
  %s2 = inlined_call_operand.hbm [shape: f32[8,128], index: 2, kind: input, shape index: {}]
  %s3 = inlined_call_operand.hbm [shape: bf16[23,256], index: 3, kind: input, shape index: {}]
  %s4 = inlined_call_operand.hbm [shape: bf16[9,256], index: 4, kind: input, shape index: {}]
  %s5 = inlined_call_operand.vmem [shape: f32[1,256], index: 5, kind: input, shape index: {}]
  %s6 = inlined_call_operand.hbm [shape: bf16[256,256], index: 6, kind: input, shape index: {}]
  %s7 = inlined_call_operand.vmem [shape: f32[1,256], index: 7, kind: input, shape index: {}]
  %s8 = inlined_call_operand.hbm [shape: bf16[256,256], index: 8, kind: input, shape index: {}]
  %s9 = inlined_call_operand.vmem [shape: f32[1,256], index: 9, kind: input, shape index: {}]
  %s10 = inlined_call_operand.hbm [shape: bf16[256,128], index: 10, kind: input, shape index: {}]
  %s11 = inlined_call_operand.vmem [shape: f32[1,128], index: 11, kind: input, shape index: {}]
  %s12 = inlined_call_operand.hbm [shape: bf16[256,128], index: 12, kind: input, shape index: {}]
  %s13 = inlined_call_operand.vmem [shape: f32[1,128], index: 13, kind: input, shape index: {}]
  %s14 = inlined_call_operand.hbm [shape: f32[8,128], index: 14, kind: output, shape index: {}]
  %s15 = sld [smem:[#allocation0]]
  $region102: #{tpu_custom_call.1} parent=0
    _
  %s17 = ssub.s32 1, %s15
  %s18 = scalar_select 0, %s17, %s15
  $region1: #{tpu_custom_call.1} parent=0
    #allocation2 [shape = 'u8[4096]{0}', space=vmem, size = 0x1000, scoped, tag = 'input window, operand 0, single buffered']
    #allocation3 [shape = 's32[1]{0}', space=sflag, size = 0x4, scoped, tag = 'scoped memory for tpu_custom_call.1']
    #allocation4 [shape = 's32[1]{0}', space=sflag, size = 0x4, scoped, tag = 'scoped memory for tpu_custom_call.1']
    #allocation5 [shape = 'u8[4096]{0}', space=vmem, size = 0x1000, scoped, tag = 'input window, operand 1, single buffered']
    #allocation6 [shape = 's32[1]{0}', space=sflag, size = 0x4, scoped, tag = 'scoped memory for tpu_custom_call.1']
    #allocation7 [shape = 'u8[4096]{0}', space=vmem, size = 0x1000, scoped, tag = 'input window, operand 2, single buffered']
    #allocation8 [shape = 'u8[12288]{0}', space=vmem, size = 0x3000, scoped, tag = 'input window, operand 3, single buffered']
    #allocation9 [shape = 's32[1]{0}', space=sflag, size = 0x4, scoped, tag = 'scoped memory for tpu_custom_call.1']
    #allocation10 [shape = 'u8[8192]{0}', space=vmem, size = 0x2000, scoped, tag = 'input window, operand 4, single buffered']
    #allocation11 [shape = 'u8[131072]{0}', space=vmem, size = 0x20000, scoped, tag = 'input window, operand 6, single buffered']
    #allocation12 [shape = 's32[1]{0}', space=sflag, size = 0x4, scoped, tag = 'scoped memory for tpu_custom_call.1']
    #allocation13 [shape = 'u8[131072]{0}', space=vmem, size = 0x20000, scoped, tag = 'input window, operand 8, single buffered']
    #allocation14 [shape = 'u8[65536]{0}', space=vmem, size = 0x10000, scoped, tag = 'input window, operand 10, single buffered']
    #allocation15 [shape = 's32[1]{0}', space=sflag, size = 0x4, scoped, tag = 'scoped memory for tpu_custom_call.1']
    #allocation16 [shape = 'u8[65536]{0}', space=vmem, size = 0x10000, scoped, tag = 'input window, operand 12, single buffered']
    #allocation17 [shape = 'u8[4096]{0}', space=vmem, size = 0x1000, scoped, tag = 'output window, operand 0, single buffered']
    %19 = vsyncpa [#allocation3], 0
    %20 = vsyncpa [#allocation6], 0
    %21 = vsyncpa [#allocation9], 0
    %22 = vsyncpa [#allocation12], 0
    %23 = vsyncpa [#allocation15], 0
    %24 = vsyncpa [#allocation4], 0
    // Predicated region
    $region2: #{tpu_custom_call.1} parent=1 // pred_check
      _
    $region3: #{tpu_custom_call.1} parent=1 // pred_check_branch
      %26 = sbr.rel (0) target = $region5
    $region4: #{tpu_custom_call.1} parent=1 // pred_region
      %s28 = ssub.s32 128, 128
      %29 = vsyncadd [#allocation3], %s28
      %s31 = sshll.u32 [#allocation2], 4
      %s32 = int_to_ptr.vmem [resolvable:$true] %s31
      %34 = dma.hbm_to_vmem [thread:$0]  %s0, 128, %s32, [#allocation3]
    $region5: #{tpu_custom_call.1} parent=1 // pred_fallthru
      _
    // Predicated region
    $region6: #{tpu_custom_call.1} parent=1 // pred_check
      _
    $region7: #{tpu_custom_call.1} parent=1 // pred_check_branch
      %36 = sbr.rel (0) target = $region9
    $region8: #{tpu_custom_call.1} parent=1 // pred_region
      %s38 = ssub.s32 128, 128
      %39 = vsyncadd [#allocation6], %s38
      %s41 = sshll.u32 [#allocation5], 4
      %s42 = int_to_ptr.vmem [resolvable:$true] %s41
      %44 = dma.hbm_to_vmem [thread:$0]  %s1, 128, %s42, [#allocation6]
    $region9: #{tpu_custom_call.1} parent=1 // pred_fallthru
      _
    // Predicated region
    $region10: #{tpu_custom_call.1} parent=1 // pred_check
      _
    $region11: #{tpu_custom_call.1} parent=1 // pred_check_branch
      %46 = sbr.rel (0) target = $region13
    $region12: #{tpu_custom_call.1} parent=1 // pred_region
      %s48 = ssub.s32 128, 128
      %49 = vsyncadd [#allocation6], %s48
      %s51 = sshll.u32 [#allocation7], 4
      %s52 = int_to_ptr.vmem [resolvable:$true] %s51
      %54 = dma.hbm_to_vmem [thread:$0]  %s2, 128, %s52, [#allocation6]
    $region13: #{tpu_custom_call.1} parent=1 // pred_fallthru
      _
    // Predicated region
    $region14: #{tpu_custom_call.1} parent=1 // pred_check
      _
    $region15: #{tpu_custom_call.1} parent=1 // pred_check_branch
      %56 = sbr.rel (0) target = $region17
    $region16: #{tpu_custom_call.1} parent=1 // pred_region
      %s58 = ssub.s32 384, 384
      %59 = vsyncadd [#allocation9], %s58
      %s60 = sshll.u32 [#allocation8], 4
      %s61 = int_to_ptr.vmem [resolvable:$true] %s60
      %66 = dma.hbm_to_vmem [thread:$0]  %s3, 384, %s61, [#allocation9], 128, 128, 8
    $region17: #{tpu_custom_call.1} parent=1 // pred_fallthru
      _
    // Predicated region
    $region18: #{tpu_custom_call.1} parent=1 // pred_check
      _
    $region19: #{tpu_custom_call.1} parent=1 // pred_check_branch
      %68 = sbr.rel (0) target = $region21
    $region20: #{tpu_custom_call.1} parent=1 // pred_region
      %s70 = ssub.s32 256, 256
      %71 = vsyncadd [#allocation9], %s70
      %s72 = sshll.u32 [#allocation10], 4
      %s73 = int_to_ptr.vmem [resolvable:$true] %s72
      %78 = dma.hbm_to_vmem [thread:$0]  %s4, 256, %s73, [#allocation9], 128, 128, 8
    $region21: #{tpu_custom_call.1} parent=1 // pred_fallthru
      _
    // Predicated region
    $region22: #{tpu_custom_call.1} parent=1 // pred_check
      _
    $region23: #{tpu_custom_call.1} parent=1 // pred_check_branch
      %80 = sbr.rel (0) target = $region25
    $region24: #{tpu_custom_call.1} parent=1 // pred_region
      _
    $region25: #{tpu_custom_call.1} parent=1 // pred_fallthru
      _
    // Predicated region
    $region26: #{tpu_custom_call.1} parent=1 // pred_check
      _
    $region27: #{tpu_custom_call.1} parent=1 // pred_check_branch
      %82 = sbr.rel (0) target = $region29
    $region28: #{tpu_custom_call.1} parent=1 // pred_region
      %s84 = ssub.s32 4096, 4096
      %85 = vsyncadd [#allocation12], %s84
      %s86 = sshll.u32 [#allocation11], 4
      %s87 = int_to_ptr.vmem [resolvable:$true] %s86
      %92 = dma.hbm_to_vmem [thread:$0]  %s6, 4096, %s87, [#allocation12], 128, 128, 8
    $region29: #{tpu_custom_call.1} parent=1 // pred_fallthru
      _
    // Predicated region
    $region30: #{tpu_custom_call.1} parent=1 // pred_check
      _
    $region31: #{tpu_custom_call.1} parent=1 // pred_check_branch
      %94 = sbr.rel (0) target = $region33
    $region32: #{tpu_custom_call.1} parent=1 // pred_region
      _
    $region33: #{tpu_custom_call.1} parent=1 // pred_fallthru
      _
    // Predicated region
    $region34: #{tpu_custom_call.1} parent=1 // pred_check
      _
    $region35: #{tpu_custom_call.1} parent=1 // pred_check_branch
      %96 = sbr.rel (0) target = $region37
    $region36: #{tpu_custom_call.1} parent=1 // pred_region
      %s98 = ssub.s32 4096, 4096
      %99 = vsyncadd [#allocation12], %s98
      %s100 = sshll.u32 [#allocation13], 4
      %s101 = int_to_ptr.vmem [resolvable:$true] %s100
      %106 = dma.hbm_to_vmem [thread:$0]  %s8, 4096, %s101, [#allocation12], 128, 128, 8
    $region37: #{tpu_custom_call.1} parent=1 // pred_fallthru
      _
    // Predicated region
    $region38: #{tpu_custom_call.1} parent=1 // pred_check
      _
    $region39: #{tpu_custom_call.1} parent=1 // pred_check_branch
      %108 = sbr.rel (0) target = $region41
    $region40: #{tpu_custom_call.1} parent=1 // pred_region
      _
    $region41: #{tpu_custom_call.1} parent=1 // pred_fallthru
      _
    // Predicated region
    $region42: #{tpu_custom_call.1} parent=1 // pred_check
      _
    $region43: #{tpu_custom_call.1} parent=1 // pred_check_branch
      %110 = sbr.rel (0) target = $region45
    $region44: #{tpu_custom_call.1} parent=1 // pred_region
      %s112 = ssub.s32 2048, 2048
      %113 = vsyncadd [#allocation15], %s112
      %s114 = sshll.u32 [#allocation14], 4
      %s115 = int_to_ptr.vmem [resolvable:$true] %s114
      %120 = dma.hbm_to_vmem [thread:$0]  %s10, 2048, %s115, [#allocation15], 64, 64, 4
    $region45: #{tpu_custom_call.1} parent=1 // pred_fallthru
      _
    // Predicated region
    $region46: #{tpu_custom_call.1} parent=1 // pred_check
      _
    $region47: #{tpu_custom_call.1} parent=1 // pred_check_branch
      %122 = sbr.rel (0) target = $region49
    $region48: #{tpu_custom_call.1} parent=1 // pred_region
      _
    $region49: #{tpu_custom_call.1} parent=1 // pred_fallthru
      _
    // Predicated region
    $region50: #{tpu_custom_call.1} parent=1 // pred_check
      _
    $region51: #{tpu_custom_call.1} parent=1 // pred_check_branch
      %124 = sbr.rel (0) target = $region53
    $region52: #{tpu_custom_call.1} parent=1 // pred_region
      %s126 = ssub.s32 2048, 2048
      %127 = vsyncadd [#allocation15], %s126
      %s128 = sshll.u32 [#allocation16], 4
      %s129 = int_to_ptr.vmem [resolvable:$true] %s128
      %134 = dma.hbm_to_vmem [thread:$0]  %s12, 2048, %s129, [#allocation15], 64, 64, 4
    $region53: #{tpu_custom_call.1} parent=1 // pred_fallthru
      _
    // Predicated region
    $region54: #{tpu_custom_call.1} parent=1 // pred_check
      _
    $region55: #{tpu_custom_call.1} parent=1 // pred_check_branch
      %136 = sbr.rel (0) target = $region57
    $region56: #{tpu_custom_call.1} parent=1 // pred_region
      _
    $region57: #{tpu_custom_call.1} parent=1 // pred_fallthru
      _
    // Predicated region
    $region58: #{tpu_custom_call.1} parent=1 // pred_check
      _
    $region59: #{tpu_custom_call.1} parent=1 // pred_check_branch
      %138 = sbr.rel (0) target = $region61
    $region60: #{tpu_custom_call.1} parent=1 // pred_region
      %139 = dma.done [#allocation3], 128
    $region61: #{tpu_custom_call.1} parent=1 // pred_fallthru
      _
    // Predicated region
    $region62: #{tpu_custom_call.1} parent=1 // pred_check
      _
    $region63: #{tpu_custom_call.1} parent=1 // pred_check_branch
      %141 = sbr.rel (0) target = $region65
    $region64: #{tpu_custom_call.1} parent=1 // pred_region
      %142 = dma.done [#allocation6], 128
    $region65: #{tpu_custom_call.1} parent=1 // pred_fallthru
      _
    // Predicated region
    $region66: #{tpu_custom_call.1} parent=1 // pred_check
      _
    $region67: #{tpu_custom_call.1} parent=1 // pred_check_branch
      %144 = sbr.rel (0) target = $region69
    $region68: #{tpu_custom_call.1} parent=1 // pred_region
      %145 = dma.done [#allocation6], 128
    $region69: #{tpu_custom_call.1} parent=1 // pred_fallthru
      _
    // Predicated region
    $region70: #{tpu_custom_call.1} parent=1 // pred_check
      _
    $region71: #{tpu_custom_call.1} parent=1 // pred_check_branch
      %147 = sbr.rel (0) target = $region73
    $region72: #{tpu_custom_call.1} parent=1 // pred_region
      %148 = dma.done [#allocation9], 384
    $region73: #{tpu_custom_call.1} parent=1 // pred_fallthru
      _
    // Predicated region
    $region74: #{tpu_custom_call.1} parent=1 // pred_check
      _
    $region75: #{tpu_custom_call.1} parent=1 // pred_check_branch
      %150 = sbr.rel (0) target = $region77
    $region76: #{tpu_custom_call.1} parent=1 // pred_region
      %151 = dma.done [#allocation9], 256
    $region77: #{tpu_custom_call.1} parent=1 // pred_fallthru
      _
    // Predicated region
    $region78: #{tpu_custom_call.1} parent=1 // pred_check
      _
    $region79: #{tpu_custom_call.1} parent=1 // pred_check_branch
      %153 = sbr.rel (0) target = $region81
    $region80: #{tpu_custom_call.1} parent=1 // pred_region
      %154 = dma.done [#allocation12], 4096
    $region81: #{tpu_custom_call.1} parent=1 // pred_fallthru
      _
    // Predicated region
    $region82: #{tpu_custom_call.1} parent=1 // pred_check
      _
    $region83: #{tpu_custom_call.1} parent=1 // pred_check_branch
      %156 = sbr.rel (0) target = $region85
    $region84: #{tpu_custom_call.1} parent=1 // pred_region
      %157 = dma.done [#allocation12], 4096
    $region85: #{tpu_custom_call.1} parent=1 // pred_fallthru
      _
    // Predicated region
    $region86: #{tpu_custom_call.1} parent=1 // pred_check
      _
    $region87: #{tpu_custom_call.1} parent=1 // pred_check_branch
      %159 = sbr.rel (0) target = $region89
    $region88: #{tpu_custom_call.1} parent=1 // pred_region
      %160 = dma.done [#allocation15], 2048
    $region89: #{tpu_custom_call.1} parent=1 // pred_fallthru
      _
    // Predicated region
    $region90: #{tpu_custom_call.1} parent=1 // pred_check
      _
    $region91: #{tpu_custom_call.1} parent=1 // pred_check_branch
      %162 = sbr.rel (0) target = $region93
    $region92: #{tpu_custom_call.1} parent=1 // pred_region
      %163 = dma.done [#allocation15], 2048
    $region93: #{tpu_custom_call.1} parent=1 // pred_fallthru
      _
    %v165 = vld [vmem:[#allocation2] sm:$0xff]
    %v166 = vpack.c.bf16 %v165, %v165
    %v167 = vld [vmem:[#allocation5] sm:$0xff]
    %v168 = vpack.c.bf16 %v167, %v167
    %v169 = vld [vmem:[#allocation7] sm:$0xff]
    %v170 = vld [vmem:[#allocation8] sm:$0xff]
    %v171 = vld [vmem:[#allocation8 + $0x8] sm:$0xff]
    %v172 = vld [vmem:[#allocation8 + $0x10] sm:$0xff]
    %v173 = vld [vmem:[#allocation10] sm:$0xff]
    %v174 = vld [vmem:[#allocation10 + $0x8] sm:$0x11]
    %v177 = vunpack.c.l.b16 %v173
    %v178 = vunpack.c.h.b16 %v173
    %v179 = vunpack.c.l.b16 %v174
    %v180 = vunpack.c.h.b16 %v174
    %v181 = vpack.c.b16 %v179, %v177
    %v182 = vpack.c.b16 %v180, %v178
    %vm183 = vcmask 72704
    %v185 = vsel %vm183, %v168, 0
    %vm187 = vcmask 1043456
    %vm188 = vcmask 1044480
    %v189 = vsel %vm187, 4294967295, 65535
    %v190 = vsel %vm188, %v189, 0
    %v192 = vand.u32 %v181, %v190
    %v195 = vand.u32 %v182, %v190
    %197 = vmatprep.subr.bf16.mxu0 %v195
    %198 = vmatpush1.bf16.msra.mxu0 %v192
    %199 = vmatprep.subr.bf16.mxu0 0
    %200 = vmatpush1.bf16.msra.mxu0 0
    %201 = vmatprep.subr.bf16.mxu0 0
    %202 = vmatpush1.bf16.msra.mxu0 0
    %203 = vmatprep.subr.bf16.mxu0 0
    %204 = vmatpush1.bf16.msra.mxu0 0
    %205 = vmatprep.subr.bf16.mxu0 0
    %206 = vmatpush1.bf16.msra.mxu0 0
    %207 = vmatprep.subr.bf16.mxu0 0
    %208 = vmatpush1.bf16.msra.mxu0 0
    %209 = vmatprep.subr.bf16.mxu0 0
    %210 = vmatpush1.bf16.msra.mxu0 0
    %211 = vmatprep.subr.bf16.mxu0 0
    %212 = vmatpush1.bf16.msra.mxu0 0
    %213 = vmatprep.subr.bf16.mxu0 0
    %214 = vmatpush1.bf16.msra.mxu0 0
    %215 = vmatprep.subr.bf16.mxu0 0
    %216 = vmatpush1.bf16.msra.mxu0 0
    %217 = vmatprep.subr.bf16.mxu0 0
    %218 = vmatpush1.bf16.msra.mxu0 0
    %219 = vmatprep.subr.bf16.mxu0 0
    %220 = vmatpush1.bf16.msra.mxu0 0
    %221 = vmatprep.subr.bf16.mxu0 0
    %222 = vmatpush1.bf16.msra.mxu0 0
    %223 = vmatprep.subr.bf16.mxu0 0
    %224 = vmatpush1.bf16.msra.mxu0 0
    %225 = vmatprep.subr.bf16.mxu0 0
    %226 = vmatpush1.bf16.msra.mxu0 0
    %227 = vmatprep.subr.bf16.mxu0 0
    %228 = vmatpush1.bf16.msra.mxu0 0
    %229 = vmatprep.mubr.bf16.mxu0 0
    %230 = vmatmul.mubr.bf16.gmra.mrb[0].mxu0 %v185
    %v231 = vpop.f32.mrb[0].mxu0
    %v232 = vadd.f32 0.0, %v231
    %v233 = vpop.f32.mrb[0].mxu0
    %v234 = vadd.f32 0.0, %v233
    %v235 = vpop.f32.mrb[0].mxu0
    %v236 = vpop.f32.mrb[0].mxu0
    %237 = vdwg.mxu0
    %v241 = vunpack.c.l.b16 %v170
    %v242 = vunpack.c.h.b16 %v170
    %v243 = vunpack.c.l.b16 %v171
    %v244 = vunpack.c.h.b16 %v171
    %v245 = vunpack.c.l.b16 %v172
    %v246 = vunpack.c.h.b16 %v172
    %v247 = vpack.c.b16 %v243, %v241
    %v248 = vpack.c.b16 %v244, %v242
    %v249 = vpack.c.b16 %v245, %v245
    %v250 = vpack.c.b16 %v246, %v246
    %vm253 = vcmask 187392
    %v255 = vsel %vm253, %v166, 0
    %vm257 = vcmask 1042432
    %v258 = vsel %vm257, 4294967295, 65535
    %v259 = vsel %vm187, %v258, 0
    %v261 = vand.u32 %v249, %v259
    %v264 = vand.u32 %v250, %v259
    %266 = vmatprep.subr.bf16.mxu0 %v248
    %267 = vmatpush1.bf16.msra.mxu0 %v247
    %268 = vmatprep.subr.bf16.mxu0 %v264
    %269 = vmatpush1.bf16.msra.mxu0 %v261
    %270 = vmatprep.subr.bf16.mxu0 0
    %271 = vmatpush1.bf16.msra.mxu0 0
    %272 = vmatprep.subr.bf16.mxu0 0
    %273 = vmatpush1.bf16.msra.mxu0 0
    %274 = vmatprep.subr.bf16.mxu0 0
    %275 = vmatpush1.bf16.msra.mxu0 0
    %276 = vmatprep.subr.bf16.mxu0 0
    %277 = vmatpush1.bf16.msra.mxu0 0
    %278 = vmatprep.subr.bf16.mxu0 0
    %279 = vmatpush1.bf16.msra.mxu0 0
    %280 = vmatprep.subr.bf16.mxu0 0
    %281 = vmatpush1.bf16.msra.mxu0 0
    %282 = vmatprep.subr.bf16.mxu0 0
    %283 = vmatpush1.bf16.msra.mxu0 0
    %284 = vmatprep.subr.bf16.mxu0 0
    %285 = vmatpush1.bf16.msra.mxu0 0
    %286 = vmatprep.subr.bf16.mxu0 0
    %287 = vmatpush1.bf16.msra.mxu0 0
    %288 = vmatprep.subr.bf16.mxu0 0
    %289 = vmatpush1.bf16.msra.mxu0 0
    %290 = vmatprep.subr.bf16.mxu0 0
    %291 = vmatpush1.bf16.msra.mxu0 0
    %292 = vmatprep.subr.bf16.mxu0 0
    %293 = vmatpush1.bf16.msra.mxu0 0
    %294 = vmatprep.subr.bf16.mxu0 0
    %295 = vmatpush1.bf16.msra.mxu0 0
    %296 = vmatprep.subr.bf16.mxu0 0
    %297 = vmatpush1.bf16.msra.mxu0 0
    %298 = vmatprep.mubr.bf16.mxu0 0
    %299 = vmatmul.mubr.bf16.gmra.mrb[0].mxu0 %v255
    %v300 = vpop.f32.mrb[0].mxu0
    %v301 = vadd.f32 %v232, %v300
    %v302 = vpop.f32.mrb[0].mxu0
    %v303 = vadd.f32 %v234, %v302
    %v304 = vpop.f32.mrb[0].mxu0
    %v305 = vpop.f32.mrb[0].mxu0
    %306 = vdwg.mxu0
    %v307 = vld [vmem:[%s5] sm:$0x3]
    %v309 = vlaneseq
    %v310 = vshrl.u32 %v309, 7
    %v311 = vsub.s32 0, %v310
    %v312 = vrot.slane %v307, %v311
    %v313 = vlaneseq
    %v314 = vshrl.u32 %v313, 7
    %v315 = vsub.s32 1, %v314
    %v316 = vrot.slane %v307, %v315
    %v319 = vadd.f32 %v301, %v312
    %v320 = vadd.f32 %v303, %v316
    %v321 = vpack.c.bf16 %v319, %v319
    %v322 = vpack.c.bf16 %v320, %v320
    %v323 = vld [vmem:[#allocation11] sm:$0xff]
    %v324 = vld [vmem:[#allocation11 + $0x8] sm:$0xff]
    %v325 = vld [vmem:[#allocation11 + $0x10] sm:$0xff]
    %v326 = vld [vmem:[#allocation11 + $0x18] sm:$0xff]
    %v327 = vld [vmem:[#allocation11 + $0x20] sm:$0xff]
    %v328 = vld [vmem:[#allocation11 + $0x28] sm:$0xff]
    %v329 = vld [vmem:[#allocation11 + $0x30] sm:$0xff]
    %v330 = vld [vmem:[#allocation11 + $0x38] sm:$0xff]
    %v331 = vld [vmem:[#allocation11 + $0x40] sm:$0xff]
    %v332 = vld [vmem:[#allocation11 + $0x48] sm:$0xff]
    %v333 = vld [vmem:[#allocation11 + $0x50] sm:$0xff]
    %v334 = vld [vmem:[#allocation11 + $0x58] sm:$0xff]
    %v335 = vld [vmem:[#allocation11 + $0x60] sm:$0xff]
    %v336 = vld [vmem:[#allocation11 + $0x68] sm:$0xff]
    %v337 = vld [vmem:[#allocation11 + $0x70] sm:$0xff]
    %v338 = vld [vmem:[#allocation11 + $0x78] sm:$0xff]
    %v339 = vld [vmem:[#allocation11 + $0x80] sm:$0xff]
    %v340 = vld [vmem:[#allocation11 + $0x88] sm:$0xff]
    %v341 = vld [vmem:[#allocation11 + $0x90] sm:$0xff]
    %v342 = vld [vmem:[#allocation11 + $0x98] sm:$0xff]
    %v343 = vld [vmem:[#allocation11 + $0xa0] sm:$0xff]
    %v344 = vld [vmem:[#allocation11 + $0xa8] sm:$0xff]
    %v345 = vld [vmem:[#allocation11 + $0xb0] sm:$0xff]
    %v346 = vld [vmem:[#allocation11 + $0xb8] sm:$0xff]
    %v347 = vld [vmem:[#allocation11 + $0xc0] sm:$0xff]
    %v348 = vld [vmem:[#allocation11 + $0xc8] sm:$0xff]
    %v349 = vld [vmem:[#allocation11 + $0xd0] sm:$0xff]
    %v350 = vld [vmem:[#allocation11 + $0xd8] sm:$0xff]
    %v351 = vld [vmem:[#allocation11 + $0xe0] sm:$0xff]
    %v352 = vld [vmem:[#allocation11 + $0xe8] sm:$0xff]
    %v353 = vld [vmem:[#allocation11 + $0xf0] sm:$0xff]
    %v354 = vld [vmem:[#allocation11 + $0xf8] sm:$0xff]
    %v355 = vld [vmem:[%s7] sm:$0x3]
    %v357 = vlaneseq
    %v358 = vshrl.u32 %v357, 7
    %v359 = vsub.s32 0, %v358
    %v360 = vrot.slane %v355, %v359
    %v361 = vlaneseq
    %v362 = vshrl.u32 %v361, 7
    %v363 = vsub.s32 1, %v362
    %v364 = vrot.slane %v355, %v363
    %v399 = vunpack.c.l.b16 %v323
    %v400 = vunpack.c.h.b16 %v323
    %v401 = vunpack.c.l.b16 %v324
    %v402 = vunpack.c.h.b16 %v324
    %v403 = vunpack.c.l.b16 %v325
    %v404 = vunpack.c.h.b16 %v325
    %v405 = vunpack.c.l.b16 %v326
    %v406 = vunpack.c.h.b16 %v326
    %v407 = vunpack.c.l.b16 %v327
    %v408 = vunpack.c.h.b16 %v327
    %v409 = vunpack.c.l.b16 %v328
    %v410 = vunpack.c.h.b16 %v328
    %v411 = vunpack.c.l.b16 %v329
    %v412 = vunpack.c.h.b16 %v329
    %v413 = vunpack.c.l.b16 %v330
    %v414 = vunpack.c.h.b16 %v330
    %v415 = vunpack.c.l.b16 %v331
    %v416 = vunpack.c.h.b16 %v331
    %v417 = vunpack.c.l.b16 %v332
    %v418 = vunpack.c.h.b16 %v332
    %v419 = vunpack.c.l.b16 %v333
    %v420 = vunpack.c.h.b16 %v333
    %v421 = vunpack.c.l.b16 %v334
    %v422 = vunpack.c.h.b16 %v334
    %v423 = vunpack.c.l.b16 %v335
    %v424 = vunpack.c.h.b16 %v335
    %v425 = vunpack.c.l.b16 %v336
    %v426 = vunpack.c.h.b16 %v336
    %v427 = vunpack.c.l.b16 %v337
    %v428 = vunpack.c.h.b16 %v337
    %v429 = vunpack.c.l.b16 %v338
    %v430 = vunpack.c.h.b16 %v338
    %v431 = vunpack.c.l.b16 %v339
    %v432 = vunpack.c.h.b16 %v339
    %v433 = vunpack.c.l.b16 %v340
    %v434 = vunpack.c.h.b16 %v340
    %v435 = vunpack.c.l.b16 %v341
    %v436 = vunpack.c.h.b16 %v341
    %v437 = vunpack.c.l.b16 %v342
    %v438 = vunpack.c.h.b16 %v342
    %v439 = vunpack.c.l.b16 %v343
    %v440 = vunpack.c.h.b16 %v343
    %v441 = vunpack.c.l.b16 %v344
    %v442 = vunpack.c.h.b16 %v344
    %v443 = vunpack.c.l.b16 %v345
    %v444 = vunpack.c.h.b16 %v345
    %v445 = vunpack.c.l.b16 %v346
    %v446 = vunpack.c.h.b16 %v346
    %v447 = vunpack.c.l.b16 %v347
    %v448 = vunpack.c.h.b16 %v347
    %v449 = vunpack.c.l.b16 %v348
    %v450 = vunpack.c.h.b16 %v348
    %v451 = vunpack.c.l.b16 %v349
    %v452 = vunpack.c.h.b16 %v349
    %v453 = vunpack.c.l.b16 %v350
    %v454 = vunpack.c.h.b16 %v350
    %v455 = vunpack.c.l.b16 %v351
    %v456 = vunpack.c.h.b16 %v351
    %v457 = vunpack.c.l.b16 %v352
    %v458 = vunpack.c.h.b16 %v352
    %v459 = vunpack.c.l.b16 %v353
    %v460 = vunpack.c.h.b16 %v353
    %v461 = vunpack.c.l.b16 %v354
    %v462 = vunpack.c.h.b16 %v354
    %v463 = vpack.c.b16 %v401, %v399
    %v464 = vpack.c.b16 %v402, %v400
    %v465 = vpack.c.b16 %v405, %v403
    %v466 = vpack.c.b16 %v406, %v404
    %v467 = vpack.c.b16 %v409, %v407
    %v468 = vpack.c.b16 %v410, %v408
    %v469 = vpack.c.b16 %v413, %v411
    %v470 = vpack.c.b16 %v414, %v412
    %v471 = vpack.c.b16 %v417, %v415
    %v472 = vpack.c.b16 %v418, %v416
    %v473 = vpack.c.b16 %v421, %v419
    %v474 = vpack.c.b16 %v422, %v420
    %v475 = vpack.c.b16 %v425, %v423
    %v476 = vpack.c.b16 %v426, %v424
    %v477 = vpack.c.b16 %v429, %v427
    %v478 = vpack.c.b16 %v430, %v428
    %v479 = vpack.c.b16 %v433, %v431
    %v480 = vpack.c.b16 %v434, %v432
    %v481 = vpack.c.b16 %v437, %v435
    %v482 = vpack.c.b16 %v438, %v436
    %v483 = vpack.c.b16 %v441, %v439
    %v484 = vpack.c.b16 %v442, %v440
    %v485 = vpack.c.b16 %v445, %v443
    %v486 = vpack.c.b16 %v446, %v444
    %v487 = vpack.c.b16 %v449, %v447
    %v488 = vpack.c.b16 %v450, %v448
    %v489 = vpack.c.b16 %v453, %v451
    %v490 = vpack.c.b16 %v454, %v452
    %v491 = vpack.c.b16 %v457, %v455
    %v492 = vpack.c.b16 %v458, %v456
    %v493 = vpack.c.b16 %v461, %v459
    %v494 = vpack.c.b16 %v462, %v460
    %527 = vmatprep.subr.bf16.mxu0 %v464
    %528 = vmatpush1.bf16.msra.mxu0 %v463
    %529 = vmatprep.subr.bf16.mxu0 %v466
    %530 = vmatpush1.bf16.msra.mxu0 %v465
    %531 = vmatprep.subr.bf16.mxu0 %v468
    %532 = vmatpush1.bf16.msra.mxu0 %v467
    %533 = vmatprep.subr.bf16.mxu0 %v470
    %534 = vmatpush1.bf16.msra.mxu0 %v469
    %535 = vmatprep.subr.bf16.mxu0 %v472
    %536 = vmatpush1.bf16.msra.mxu0 %v471
    %537 = vmatprep.subr.bf16.mxu0 %v474
    %538 = vmatpush1.bf16.msra.mxu0 %v473
    %539 = vmatprep.subr.bf16.mxu0 %v476
    %540 = vmatpush1.bf16.msra.mxu0 %v475
    %541 = vmatprep.subr.bf16.mxu0 %v478
    %542 = vmatpush1.bf16.msra.mxu0 %v477
    %543 = vmatprep.subr.bf16.mxu0 %v480
    %544 = vmatpush1.bf16.msra.mxu0 %v479
    %545 = vmatprep.subr.bf16.mxu0 %v482
    %546 = vmatpush1.bf16.msra.mxu0 %v481
    %547 = vmatprep.subr.bf16.mxu0 %v484
    %548 = vmatpush1.bf16.msra.mxu0 %v483
    %549 = vmatprep.subr.bf16.mxu0 %v486
    %550 = vmatpush1.bf16.msra.mxu0 %v485
    %551 = vmatprep.subr.bf16.mxu0 %v488
    %552 = vmatpush1.bf16.msra.mxu0 %v487
    %553 = vmatprep.subr.bf16.mxu0 %v490
    %554 = vmatpush1.bf16.msra.mxu0 %v489
    %555 = vmatprep.subr.bf16.mxu0 %v492
    %556 = vmatpush1.bf16.msra.mxu0 %v491
    %557 = vmatprep.subr.bf16.mxu0 %v494
    %558 = vmatpush1.bf16.msra.mxu0 %v493
    %559 = vmatprep.mubr.bf16.mxu0 %v322
    %560 = vmatmul.mubr.bf16.gmra.mrb[0].mxu0 %v321
    %v561 = vpop.f32.mrb[0].mxu0
    %v562 = vadd.f32 %v360, %v561
    %v563 = vpop.f32.mrb[0].mxu0
    %v564 = vadd.f32 %v364, %v563
    %v565 = vpop.f32.mrb[0].mxu0
    %v566 = vpop.f32.mrb[0].mxu0
    %567 = vdwg.mxu0
    %v568 = vmax.f32 %v562, 0.0
    %v569 = vmax.f32 %v564, 0.0
    %v570 = vadd.f32 %v319, %v568
    %v571 = vadd.f32 %v320, %v569
    %v572 = vpack.c.bf16 %v570, %v570
    %v573 = vpack.c.bf16 %v571, %v571
    %v574 = vld [vmem:[#allocation13] sm:$0xff]
    %v575 = vld [vmem:[#allocation13 + $0x8] sm:$0xff]
    %v576 = vld [vmem:[#allocation13 + $0x10] sm:$0xff]
    %v577 = vld [vmem:[#allocation13 + $0x18] sm:$0xff]
    %v578 = vld [vmem:[#allocation13 + $0x20] sm:$0xff]
    %v579 = vld [vmem:[#allocation13 + $0x28] sm:$0xff]
    %v580 = vld [vmem:[#allocation13 + $0x30] sm:$0xff]
    %v581 = vld [vmem:[#allocation13 + $0x38] sm:$0xff]
    %v582 = vld [vmem:[#allocation13 + $0x40] sm:$0xff]
    %v583 = vld [vmem:[#allocation13 + $0x48] sm:$0xff]
    %v584 = vld [vmem:[#allocation13 + $0x50] sm:$0xff]
    %v585 = vld [vmem:[#allocation13 + $0x58] sm:$0xff]
    %v586 = vld [vmem:[#allocation13 + $0x60] sm:$0xff]
    %v587 = vld [vmem:[#allocation13 + $0x68] sm:$0xff]
    %v588 = vld [vmem:[#allocation13 + $0x70] sm:$0xff]
    %v589 = vld [vmem:[#allocation13 + $0x78] sm:$0xff]
    %v590 = vld [vmem:[#allocation13 + $0x80] sm:$0xff]
    %v591 = vld [vmem:[#allocation13 + $0x88] sm:$0xff]
    %v592 = vld [vmem:[#allocation13 + $0x90] sm:$0xff]
    %v593 = vld [vmem:[#allocation13 + $0x98] sm:$0xff]
    %v594 = vld [vmem:[#allocation13 + $0xa0] sm:$0xff]
    %v595 = vld [vmem:[#allocation13 + $0xa8] sm:$0xff]
    %v596 = vld [vmem:[#allocation13 + $0xb0] sm:$0xff]
    %v597 = vld [vmem:[#allocation13 + $0xb8] sm:$0xff]
    %v598 = vld [vmem:[#allocation13 + $0xc0] sm:$0xff]
    %v599 = vld [vmem:[#allocation13 + $0xc8] sm:$0xff]
    %v600 = vld [vmem:[#allocation13 + $0xd0] sm:$0xff]
    %v601 = vld [vmem:[#allocation13 + $0xd8] sm:$0xff]
    %v602 = vld [vmem:[#allocation13 + $0xe0] sm:$0xff]
    %v603 = vld [vmem:[#allocation13 + $0xe8] sm:$0xff]
    %v604 = vld [vmem:[#allocation13 + $0xf0] sm:$0xff]
    %v605 = vld [vmem:[#allocation13 + $0xf8] sm:$0xff]
    %v606 = vld [vmem:[%s9] sm:$0x3]
    %v608 = vlaneseq
    %v609 = vshrl.u32 %v608, 7
    %v610 = vsub.s32 0, %v609
    %v611 = vrot.slane %v606, %v610
    %v612 = vlaneseq
    %v613 = vshrl.u32 %v612, 7
    %v614 = vsub.s32 1, %v613
    %v615 = vrot.slane %v606, %v614
    %v650 = vunpack.c.l.b16 %v574
    %v651 = vunpack.c.h.b16 %v574
    %v652 = vunpack.c.l.b16 %v575
    %v653 = vunpack.c.h.b16 %v575
    %v654 = vunpack.c.l.b16 %v576
    %v655 = vunpack.c.h.b16 %v576
    %v656 = vunpack.c.l.b16 %v577
    %v657 = vunpack.c.h.b16 %v577
    %v658 = vunpack.c.l.b16 %v578
    %v659 = vunpack.c.h.b16 %v578
    %v660 = vunpack.c.l.b16 %v579
    %v661 = vunpack.c.h.b16 %v579
    %v662 = vunpack.c.l.b16 %v580
    %v663 = vunpack.c.h.b16 %v580
    %v664 = vunpack.c.l.b16 %v581
    %v665 = vunpack.c.h.b16 %v581
    %v666 = vunpack.c.l.b16 %v582
    %v667 = vunpack.c.h.b16 %v582
    %v668 = vunpack.c.l.b16 %v583
    %v669 = vunpack.c.h.b16 %v583
    %v670 = vunpack.c.l.b16 %v584
    %v671 = vunpack.c.h.b16 %v584
    %v672 = vunpack.c.l.b16 %v585
    %v673 = vunpack.c.h.b16 %v585
    %v674 = vunpack.c.l.b16 %v586
    %v675 = vunpack.c.h.b16 %v586
    %v676 = vunpack.c.l.b16 %v587
    %v677 = vunpack.c.h.b16 %v587
    %v678 = vunpack.c.l.b16 %v588
    %v679 = vunpack.c.h.b16 %v588
    %v680 = vunpack.c.l.b16 %v589
    %v681 = vunpack.c.h.b16 %v589
    %v682 = vunpack.c.l.b16 %v590
    %v683 = vunpack.c.h.b16 %v590
    %v684 = vunpack.c.l.b16 %v591
    %v685 = vunpack.c.h.b16 %v591
    %v686 = vunpack.c.l.b16 %v592
    %v687 = vunpack.c.h.b16 %v592
    %v688 = vunpack.c.l.b16 %v593
    %v689 = vunpack.c.h.b16 %v593
    %v690 = vunpack.c.l.b16 %v594
    %v691 = vunpack.c.h.b16 %v594
    %v692 = vunpack.c.l.b16 %v595
    %v693 = vunpack.c.h.b16 %v595
    %v694 = vunpack.c.l.b16 %v596
    %v695 = vunpack.c.h.b16 %v596
    %v696 = vunpack.c.l.b16 %v597
    %v697 = vunpack.c.h.b16 %v597
    %v698 = vunpack.c.l.b16 %v598
    %v699 = vunpack.c.h.b16 %v598
    %v700 = vunpack.c.l.b16 %v599
    %v701 = vunpack.c.h.b16 %v599
    %v702 = vunpack.c.l.b16 %v600
    %v703 = vunpack.c.h.b16 %v600
    %v704 = vunpack.c.l.b16 %v601
    %v705 = vunpack.c.h.b16 %v601
    %v706 = vunpack.c.l.b16 %v602
    %v707 = vunpack.c.h.b16 %v602
    %v708 = vunpack.c.l.b16 %v603
    %v709 = vunpack.c.h.b16 %v603
    %v710 = vunpack.c.l.b16 %v604
    %v711 = vunpack.c.h.b16 %v604
    %v712 = vunpack.c.l.b16 %v605
    %v713 = vunpack.c.h.b16 %v605
    %v714 = vpack.c.b16 %v652, %v650
    %v715 = vpack.c.b16 %v653, %v651
    %v716 = vpack.c.b16 %v656, %v654
    %v717 = vpack.c.b16 %v657, %v655
    %v718 = vpack.c.b16 %v660, %v658
    %v719 = vpack.c.b16 %v661, %v659
    %v720 = vpack.c.b16 %v664, %v662
    %v721 = vpack.c.b16 %v665, %v663
    %v722 = vpack.c.b16 %v668, %v666
    %v723 = vpack.c.b16 %v669, %v667
    %v724 = vpack.c.b16 %v672, %v670
    %v725 = vpack.c.b16 %v673, %v671
    %v726 = vpack.c.b16 %v676, %v674
    %v727 = vpack.c.b16 %v677, %v675
    %v728 = vpack.c.b16 %v680, %v678
    %v729 = vpack.c.b16 %v681, %v679
    %v730 = vpack.c.b16 %v684, %v682
    %v731 = vpack.c.b16 %v685, %v683
    %v732 = vpack.c.b16 %v688, %v686
    %v733 = vpack.c.b16 %v689, %v687
    %v734 = vpack.c.b16 %v692, %v690
    %v735 = vpack.c.b16 %v693, %v691
    %v736 = vpack.c.b16 %v696, %v694
    %v737 = vpack.c.b16 %v697, %v695
    %v738 = vpack.c.b16 %v700, %v698
    %v739 = vpack.c.b16 %v701, %v699
    %v740 = vpack.c.b16 %v704, %v702
    %v741 = vpack.c.b16 %v705, %v703
    %v742 = vpack.c.b16 %v708, %v706
    %v743 = vpack.c.b16 %v709, %v707
    %v744 = vpack.c.b16 %v712, %v710
    %v745 = vpack.c.b16 %v713, %v711
    %778 = vmatprep.subr.bf16.mxu0 %v715
    %779 = vmatpush1.bf16.msra.mxu0 %v714
    %780 = vmatprep.subr.bf16.mxu0 %v717
    %781 = vmatpush1.bf16.msra.mxu0 %v716
    %782 = vmatprep.subr.bf16.mxu0 %v719
    %783 = vmatpush1.bf16.msra.mxu0 %v718
    %784 = vmatprep.subr.bf16.mxu0 %v721
    %785 = vmatpush1.bf16.msra.mxu0 %v720
    %786 = vmatprep.subr.bf16.mxu0 %v723
    %787 = vmatpush1.bf16.msra.mxu0 %v722
    %788 = vmatprep.subr.bf16.mxu0 %v725
    %789 = vmatpush1.bf16.msra.mxu0 %v724
    %790 = vmatprep.subr.bf16.mxu0 %v727
    %791 = vmatpush1.bf16.msra.mxu0 %v726
    %792 = vmatprep.subr.bf16.mxu0 %v729
    %793 = vmatpush1.bf16.msra.mxu0 %v728
    %794 = vmatprep.subr.bf16.mxu0 %v731
    %795 = vmatpush1.bf16.msra.mxu0 %v730
    %796 = vmatprep.subr.bf16.mxu0 %v733
    %797 = vmatpush1.bf16.msra.mxu0 %v732
    %798 = vmatprep.subr.bf16.mxu0 %v735
    %799 = vmatpush1.bf16.msra.mxu0 %v734
    %800 = vmatprep.subr.bf16.mxu0 %v737
    %801 = vmatpush1.bf16.msra.mxu0 %v736
    %802 = vmatprep.subr.bf16.mxu0 %v739
    %803 = vmatpush1.bf16.msra.mxu0 %v738
    %804 = vmatprep.subr.bf16.mxu0 %v741
    %805 = vmatpush1.bf16.msra.mxu0 %v740
    %806 = vmatprep.subr.bf16.mxu0 %v743
    %807 = vmatpush1.bf16.msra.mxu0 %v742
    %808 = vmatprep.subr.bf16.mxu0 %v745
    %809 = vmatpush1.bf16.msra.mxu0 %v744
    %810 = vmatprep.mubr.bf16.mxu0 %v573
    %811 = vmatmul.mubr.bf16.gmra.mrb[0].mxu0 %v572
    %v812 = vpop.f32.mrb[0].mxu0
    %v813 = vadd.f32 %v611, %v812
    %v814 = vpop.f32.mrb[0].mxu0
    %v815 = vadd.f32 %v615, %v814
    %v816 = vpop.f32.mrb[0].mxu0
    %v817 = vpop.f32.mrb[0].mxu0
    %818 = vdwg.mxu0
    %v819 = vmax.f32 %v813, 0.0
    %v820 = vmax.f32 %v815, 0.0
    %v821 = vadd.f32 %v570, %v819
    %v822 = vadd.f32 %v571, %v820
    %v823 = vpack.c.bf16 %v821, %v821
    %v824 = vpack.c.bf16 %v822, %v822
    %v825 = vld [vmem:[#allocation14] sm:$0xf]
    %v826 = vld [vmem:[#allocation14 + $0x4] sm:$0xf]
    %v827 = vld [vmem:[#allocation14 + $0x8] sm:$0xf]
    %v828 = vld [vmem:[#allocation14 + $0xc] sm:$0xf]
    %v829 = vld [vmem:[#allocation14 + $0x10] sm:$0xf]
    %v830 = vld [vmem:[#allocation14 + $0x14] sm:$0xf]
    %v831 = vld [vmem:[#allocation14 + $0x18] sm:$0xf]
    %v832 = vld [vmem:[#allocation14 + $0x1c] sm:$0xf]
    %v833 = vld [vmem:[#allocation14 + $0x20] sm:$0xf]
    %v834 = vld [vmem:[#allocation14 + $0x24] sm:$0xf]
    %v835 = vld [vmem:[#allocation14 + $0x28] sm:$0xf]
    %v836 = vld [vmem:[#allocation14 + $0x2c] sm:$0xf]
    %v837 = vld [vmem:[#allocation14 + $0x30] sm:$0xf]
    %v838 = vld [vmem:[#allocation14 + $0x34] sm:$0xf]
    %v839 = vld [vmem:[#allocation14 + $0x38] sm:$0xf]
    %v840 = vld [vmem:[#allocation14 + $0x3c] sm:$0xf]
    %v841 = vld [vmem:[#allocation14 + $0x40] sm:$0xf]
    %v842 = vld [vmem:[#allocation14 + $0x44] sm:$0xf]
    %v843 = vld [vmem:[#allocation14 + $0x48] sm:$0xf]
    %v844 = vld [vmem:[#allocation14 + $0x4c] sm:$0xf]
    %v845 = vld [vmem:[#allocation14 + $0x50] sm:$0xf]
    %v846 = vld [vmem:[#allocation14 + $0x54] sm:$0xf]
    %v847 = vld [vmem:[#allocation14 + $0x58] sm:$0xf]
    %v848 = vld [vmem:[#allocation14 + $0x5c] sm:$0xf]
    %v849 = vld [vmem:[#allocation14 + $0x60] sm:$0xf]
    %v850 = vld [vmem:[#allocation14 + $0x64] sm:$0xf]
    %v851 = vld [vmem:[#allocation14 + $0x68] sm:$0xf]
    %v852 = vld [vmem:[#allocation14 + $0x6c] sm:$0xf]
    %v853 = vld [vmem:[#allocation14 + $0x70] sm:$0xf]
    %v854 = vld [vmem:[#allocation14 + $0x74] sm:$0xf]
    %v855 = vld [vmem:[#allocation14 + $0x78] sm:$0xf]
    %v856 = vld [vmem:[#allocation14 + $0x7c] sm:$0xf]
    %v857 = vld [vmem:[%s11] sm:$0x1]
    %v859 = vlaneseq
    %v860 = vshrl.u32 %v859, 7
    %v861 = vsub.s32 0, %v860
    %v862 = vrot.slane %v857, %v861
    %v896 = vunpack.c.l.b16 %v825
    %v897 = vunpack.c.l.b16 %v826
    %v898 = vunpack.c.l.b16 %v827
    %v899 = vunpack.c.l.b16 %v828
    %v900 = vunpack.c.l.b16 %v829
    %v901 = vunpack.c.l.b16 %v830
    %v902 = vunpack.c.l.b16 %v831
    %v903 = vunpack.c.l.b16 %v832
    %v904 = vunpack.c.l.b16 %v833
    %v905 = vunpack.c.l.b16 %v834
    %v906 = vunpack.c.l.b16 %v835
    %v907 = vunpack.c.l.b16 %v836
    %v908 = vunpack.c.l.b16 %v837
    %v909 = vunpack.c.l.b16 %v838
    %v910 = vunpack.c.l.b16 %v839
    %v911 = vunpack.c.l.b16 %v840
    %v912 = vunpack.c.l.b16 %v841
    %v913 = vunpack.c.l.b16 %v842
    %v914 = vunpack.c.l.b16 %v843
    %v915 = vunpack.c.l.b16 %v844
    %v916 = vunpack.c.l.b16 %v845
    %v917 = vunpack.c.l.b16 %v846
    %v918 = vunpack.c.l.b16 %v847
    %v919 = vunpack.c.l.b16 %v848
    %v920 = vunpack.c.l.b16 %v849
    %v921 = vunpack.c.l.b16 %v850
    %v922 = vunpack.c.l.b16 %v851
    %v923 = vunpack.c.l.b16 %v852
    %v924 = vunpack.c.l.b16 %v853
    %v925 = vunpack.c.l.b16 %v854
    %v926 = vunpack.c.l.b16 %v855
    %v927 = vunpack.c.l.b16 %v856
    %v928 = vpack.c.b16 %v897, %v896
    %v929 = vpack.c.b16 %v899, %v898
    %v930 = vpack.c.b16 %v901, %v900
    %v931 = vpack.c.b16 %v903, %v902
    %v932 = vpack.c.b16 %v905, %v904
    %v933 = vpack.c.b16 %v907, %v906
    %v934 = vpack.c.b16 %v909, %v908
    %v935 = vpack.c.b16 %v911, %v910
    %v936 = vpack.c.b16 %v913, %v912
    %v937 = vpack.c.b16 %v915, %v914
    %v938 = vpack.c.b16 %v917, %v916
    %v939 = vpack.c.b16 %v919, %v918
    %v940 = vpack.c.b16 %v921, %v920
    %v941 = vpack.c.b16 %v923, %v922
    %v942 = vpack.c.b16 %v925, %v924
    %v943 = vpack.c.b16 %v927, %v926
    %960 = vmatprep.subr.bf16.mxu0 0
    %961 = vmatpush1.bf16.msra.mxu0 %v928
    %962 = vmatprep.subr.bf16.mxu0 0
    %963 = vmatpush1.bf16.msra.mxu0 %v929
    %964 = vmatprep.subr.bf16.mxu0 0
    %965 = vmatpush1.bf16.msra.mxu0 %v930
    %966 = vmatprep.subr.bf16.mxu0 0
    %967 = vmatpush1.bf16.msra.mxu0 %v931
    %968 = vmatprep.subr.bf16.mxu0 0
    %969 = vmatpush1.bf16.msra.mxu0 %v932
    %970 = vmatprep.subr.bf16.mxu0 0
    %971 = vmatpush1.bf16.msra.mxu0 %v933
    %972 = vmatprep.subr.bf16.mxu0 0
    %973 = vmatpush1.bf16.msra.mxu0 %v934
    %974 = vmatprep.subr.bf16.mxu0 0
    %975 = vmatpush1.bf16.msra.mxu0 %v935
    %976 = vmatprep.subr.bf16.mxu0 0
    %977 = vmatpush1.bf16.msra.mxu0 %v936
    %978 = vmatprep.subr.bf16.mxu0 0
    %979 = vmatpush1.bf16.msra.mxu0 %v937
    %980 = vmatprep.subr.bf16.mxu0 0
    %981 = vmatpush1.bf16.msra.mxu0 %v938
    %982 = vmatprep.subr.bf16.mxu0 0
    %983 = vmatpush1.bf16.msra.mxu0 %v939
    %984 = vmatprep.subr.bf16.mxu0 0
    %985 = vmatpush1.bf16.msra.mxu0 %v940
    %986 = vmatprep.subr.bf16.mxu0 0
    %987 = vmatpush1.bf16.msra.mxu0 %v941
    %988 = vmatprep.subr.bf16.mxu0 0
    %989 = vmatpush1.bf16.msra.mxu0 %v942
    %990 = vmatprep.subr.bf16.mxu0 0
    %991 = vmatpush1.bf16.msra.mxu0 %v943
    %992 = vmatprep.mubr.bf16.mxu0 %v824
    %993 = vmatmul.mubr.bf16.gmra.mrb[0].mxu0 %v823
    %v994 = vpop.f32.mrb[0].mxu0
    %v995 = vadd.f32 %v862, %v994
    %v996 = vpop.f32.mrb[0].mxu0
    %v997 = vpop.f32.mrb[0].mxu0
    %v998 = vpop.f32.mrb[0].mxu0
    %999 = vdwg.mxu0
    %v1000 = vmax.f32 %v995, 0.0
    %v1001 = vld [vmem:[#allocation16] sm:$0xf]
    %v1002 = vld [vmem:[#allocation16 + $0x4] sm:$0xf]
    %v1003 = vld [vmem:[#allocation16 + $0x8] sm:$0xf]
    %v1004 = vld [vmem:[#allocation16 + $0xc] sm:$0xf]
    %v1005 = vld [vmem:[#allocation16 + $0x10] sm:$0xf]
    %v1006 = vld [vmem:[#allocation16 + $0x14] sm:$0xf]
    %v1007 = vld [vmem:[#allocation16 + $0x18] sm:$0xf]
    %v1008 = vld [vmem:[#allocation16 + $0x1c] sm:$0xf]
    %v1009 = vld [vmem:[#allocation16 + $0x20] sm:$0xf]
    %v1010 = vld [vmem:[#allocation16 + $0x24] sm:$0xf]
    %v1011 = vld [vmem:[#allocation16 + $0x28] sm:$0xf]
    %v1012 = vld [vmem:[#allocation16 + $0x2c] sm:$0xf]
    %v1013 = vld [vmem:[#allocation16 + $0x30] sm:$0xf]
    %v1014 = vld [vmem:[#allocation16 + $0x34] sm:$0xf]
    %v1015 = vld [vmem:[#allocation16 + $0x38] sm:$0xf]
    %v1016 = vld [vmem:[#allocation16 + $0x3c] sm:$0xf]
    %v1017 = vld [vmem:[#allocation16 + $0x40] sm:$0xf]
    %v1018 = vld [vmem:[#allocation16 + $0x44] sm:$0xf]
    %v1019 = vld [vmem:[#allocation16 + $0x48] sm:$0xf]
    %v1020 = vld [vmem:[#allocation16 + $0x4c] sm:$0xf]
    %v1021 = vld [vmem:[#allocation16 + $0x50] sm:$0xf]
    %v1022 = vld [vmem:[#allocation16 + $0x54] sm:$0xf]
    %v1023 = vld [vmem:[#allocation16 + $0x58] sm:$0xf]
    %v1024 = vld [vmem:[#allocation16 + $0x5c] sm:$0xf]
    %v1025 = vld [vmem:[#allocation16 + $0x60] sm:$0xf]
    %v1026 = vld [vmem:[#allocation16 + $0x64] sm:$0xf]
    %v1027 = vld [vmem:[#allocation16 + $0x68] sm:$0xf]
    %v1028 = vld [vmem:[#allocation16 + $0x6c] sm:$0xf]
    %v1029 = vld [vmem:[#allocation16 + $0x70] sm:$0xf]
    %v1030 = vld [vmem:[#allocation16 + $0x74] sm:$0xf]
    %v1031 = vld [vmem:[#allocation16 + $0x78] sm:$0xf]
    %v1032 = vld [vmem:[#allocation16 + $0x7c] sm:$0xf]
    %v1033 = vld [vmem:[%s13] sm:$0x1]
    %v1035 = vlaneseq
    %v1036 = vshrl.u32 %v1035, 7
    %v1037 = vsub.s32 0, %v1036
    %v1038 = vrot.slane %v1033, %v1037
    %v1072 = vunpack.c.l.b16 %v1001
    %v1073 = vunpack.c.l.b16 %v1002
    %v1074 = vunpack.c.l.b16 %v1003
    %v1075 = vunpack.c.l.b16 %v1004
    %v1076 = vunpack.c.l.b16 %v1005
    %v1077 = vunpack.c.l.b16 %v1006
    %v1078 = vunpack.c.l.b16 %v1007
    %v1079 = vunpack.c.l.b16 %v1008
    %v1080 = vunpack.c.l.b16 %v1009
    %v1081 = vunpack.c.l.b16 %v1010
    %v1082 = vunpack.c.l.b16 %v1011
    %v1083 = vunpack.c.l.b16 %v1012
    %v1084 = vunpack.c.l.b16 %v1013
    %v1085 = vunpack.c.l.b16 %v1014
    %v1086 = vunpack.c.l.b16 %v1015
    %v1087 = vunpack.c.l.b16 %v1016
    %v1088 = vunpack.c.l.b16 %v1017
    %v1089 = vunpack.c.l.b16 %v1018
    %v1090 = vunpack.c.l.b16 %v1019
    %v1091 = vunpack.c.l.b16 %v1020
    %v1092 = vunpack.c.l.b16 %v1021
    %v1093 = vunpack.c.l.b16 %v1022
    %v1094 = vunpack.c.l.b16 %v1023
    %v1095 = vunpack.c.l.b16 %v1024
    %v1096 = vunpack.c.l.b16 %v1025
    %v1097 = vunpack.c.l.b16 %v1026
    %v1098 = vunpack.c.l.b16 %v1027
    %v1099 = vunpack.c.l.b16 %v1028
    %v1100 = vunpack.c.l.b16 %v1029
    %v1101 = vunpack.c.l.b16 %v1030
    %v1102 = vunpack.c.l.b16 %v1031
    %v1103 = vunpack.c.l.b16 %v1032
    %v1104 = vpack.c.b16 %v1073, %v1072
    %v1105 = vpack.c.b16 %v1075, %v1074
    %v1106 = vpack.c.b16 %v1077, %v1076
    %v1107 = vpack.c.b16 %v1079, %v1078
    %v1108 = vpack.c.b16 %v1081, %v1080
    %v1109 = vpack.c.b16 %v1083, %v1082
    %v1110 = vpack.c.b16 %v1085, %v1084
    %v1111 = vpack.c.b16 %v1087, %v1086
    %v1112 = vpack.c.b16 %v1089, %v1088
    %v1113 = vpack.c.b16 %v1091, %v1090
    %v1114 = vpack.c.b16 %v1093, %v1092
    %v1115 = vpack.c.b16 %v1095, %v1094
    %v1116 = vpack.c.b16 %v1097, %v1096
    %v1117 = vpack.c.b16 %v1099, %v1098
    %v1118 = vpack.c.b16 %v1101, %v1100
    %v1119 = vpack.c.b16 %v1103, %v1102
    %1136 = vmatprep.subr.bf16.mxu0 0
    %1137 = vmatpush1.bf16.msra.mxu0 %v1104
    %1138 = vmatprep.subr.bf16.mxu0 0
    %1139 = vmatpush1.bf16.msra.mxu0 %v1105
    %1140 = vmatprep.subr.bf16.mxu0 0
    %1141 = vmatpush1.bf16.msra.mxu0 %v1106
    %1142 = vmatprep.subr.bf16.mxu0 0
    %1143 = vmatpush1.bf16.msra.mxu0 %v1107
    %1144 = vmatprep.subr.bf16.mxu0 0
    %1145 = vmatpush1.bf16.msra.mxu0 %v1108
    %1146 = vmatprep.subr.bf16.mxu0 0
    %1147 = vmatpush1.bf16.msra.mxu0 %v1109
    %1148 = vmatprep.subr.bf16.mxu0 0
    %1149 = vmatpush1.bf16.msra.mxu0 %v1110
    %1150 = vmatprep.subr.bf16.mxu0 0
    %1151 = vmatpush1.bf16.msra.mxu0 %v1111
    %1152 = vmatprep.subr.bf16.mxu0 0
    %1153 = vmatpush1.bf16.msra.mxu0 %v1112
    %1154 = vmatprep.subr.bf16.mxu0 0
    %1155 = vmatpush1.bf16.msra.mxu0 %v1113
    %1156 = vmatprep.subr.bf16.mxu0 0
    %1157 = vmatpush1.bf16.msra.mxu0 %v1114
    %1158 = vmatprep.subr.bf16.mxu0 0
    %1159 = vmatpush1.bf16.msra.mxu0 %v1115
    %1160 = vmatprep.subr.bf16.mxu0 0
    %1161 = vmatpush1.bf16.msra.mxu0 %v1116
    %1162 = vmatprep.subr.bf16.mxu0 0
    %1163 = vmatpush1.bf16.msra.mxu0 %v1117
    %1164 = vmatprep.subr.bf16.mxu0 0
    %1165 = vmatpush1.bf16.msra.mxu0 %v1118
    %1166 = vmatprep.subr.bf16.mxu0 0
    %1167 = vmatpush1.bf16.msra.mxu0 %v1119
    %1168 = vmatprep.mubr.bf16.mxu0 %v824
    %1169 = vmatmul.mubr.bf16.gmra.mrb[0].mxu0 %v823
    %v1170 = vpop.f32.mrb[0].mxu0
    %v1171 = vadd.f32 %v1038, %v1170
    %v1172 = vpop.f32.mrb[0].mxu0
    %v1173 = vpop.f32.mrb[0].mxu0
    %v1174 = vpop.f32.mrb[0].mxu0
    %1175 = vdwg.mxu0
    %v1176 = vmax.f32 %v1171, 0.0
    %v1177 = vmul.f32 %v1000, 1.442695
    %v1178 = vpow.pop %v1177
    %v1179 = vmul.f32 %v169, %v1178
    %v1180 = vadd.f32 %v1179, %v1176
    %1181 = vst [vmem:[#allocation17] sm:$0xff] %v1180
    // Predicated region
    $region94: #{tpu_custom_call.1} parent=1 // pred_check
      _
    $region95: #{tpu_custom_call.1} parent=1 // pred_check_branch
      %1183 = sbr.rel (0) target = $region97
    $region96: #{tpu_custom_call.1} parent=1 // pred_region
      %s1185 = ssub.s32 128, 128
      %1186 = vsyncadd [#allocation4], %s1185
      %s1188 = sshll.u32 [#allocation17], 4
      %s1189 = int_to_ptr.vmem [resolvable:$true] %s1188
      %1191 = dma.vmem_to_hbm [thread:$0]  %s1189, 128, %s14, [#allocation4]
    $region97: #{tpu_custom_call.1} parent=1 // pred_fallthru
      _
    // Predicated region
    $region98: #{tpu_custom_call.1} parent=1 // pred_check
      _
    $region99: #{tpu_custom_call.1} parent=1 // pred_check_branch
      %1193 = sbr.rel (0) target = $region101
    $region100: #{tpu_custom_call.1} parent=1 // pred_region
      %1194 = dma.done [#allocation4], 128
    $region101: #{tpu_custom_call.1} parent=1 // pred_fallthru
      _
    %1195 = vsyncpa [#allocation3], 1
    %1196 = vsyncpa [#allocation6], 1
    %1197 = vsyncpa [#allocation9], 1
    %1198 = vsyncpa [#allocation12], 1
    %1199 = vsyncpa [#allocation15], 1
    %1200 = vsyncpa [#allocation4], 1

</llo_original>
